<compile_context>
chip_gen: v7x
topology: tpu7x:2x2x1
jax: 0.10.0
libtpu: 0.0.40
codegen_flags: <defaults>
</compile_context>

<pallas_src>
import jax
import jax.numpy as jnp
from jax.experimental import pallas as pl
from jax.experimental.pallas import tpu as pltpu


def _anglenet_kernel(x_ref, w1_ref, b1_ref, w2_ref, b2_ref, o_ref):
    """One lane-dense row tile of the residual MLP block.

    x_ref : (tm_p, pack*dim)           packed input tile (128 lanes wide)
    w1_ref: (pack*dim, pack*channel)   block-diag first Linear weight (bf16)
    b1_ref: (1, pack*channel)          lane-tiled first Linear bias (f32)
    w2_ref: (pack*channel, pack*dim)   block-diag second Linear weight (bf16)
    b2_ref: (1, pack*dim)              lane-tiled second Linear bias (f32)
    o_ref : (tm_p, pack*dim)           packed output tile = x + net(x)
    """
    x = x_ref[...].astype(jnp.float32)
    # ReLU -> Linear(dim, channel); matmul operands in bf16, f32 accumulation.
    h = jnp.maximum(x, 0.0).astype(w1_ref.dtype)
    y = jnp.dot(h, w1_ref[...], preferred_element_type=jnp.float32) + b1_ref[...]
    # ReLU -> Linear(channel, dim)
    y = jnp.maximum(y, 0.0).astype(w2_ref.dtype)
    z = jnp.dot(y, w2_ref[...], preferred_element_type=jnp.float32) + b2_ref[...]
    # residual add (tensor_add(x, net(x))) kept in f32.
    o_ref[...] = (x + z).astype(o_ref.dtype)


class AngleNetBlockPallas:
    """Holds the (packed, cast) weights and applies the Pallas kernel."""

    def __init__(self, w1, b1, w2, b2, *, tm_packed_max=2048, use_bf16_matmul=True):
        dim, channel = w1.shape
        assert w2.shape == (channel, dim)
        assert b1.shape == (channel,) and b2.shape == (dim,)
        self.dim, self.channel = dim, channel
        self.tm_packed_max = int(tm_packed_max)

        # Lane-packing factor: fold `pack` consecutive rows into one 128-lane row.
        pack = 128 // dim if (dim < 128 and 128 % dim == 0) else 1
        self.pack = pack
        # TODO(synk): if dim does not divide 128 (pack == 1), stores are
        # lane-sparse; pad dim to a multiple of 128 for full performance.

        w1 = jnp.asarray(w1, jnp.float32)
        w2 = jnp.asarray(w2, jnp.float32)
        b1 = jnp.asarray(b1, jnp.float32).reshape(1, channel)
        b2 = jnp.asarray(b2, jnp.float32).reshape(1, dim)

        # Block-diagonal weights / lane-tiled biases keep packed rows independent.
        # Done ONCE here (not per forward call).
        if pack > 1:
            eye = jnp.eye(pack, dtype=jnp.float32)
            w1p = jnp.kron(eye, w1)           # (pack*dim, pack*channel)
            w2p = jnp.kron(eye, w2)           # (pack*channel, pack*dim)
            b1p = jnp.tile(b1, (1, pack))     # (1, pack*channel)
            b2p = jnp.tile(b2, (1, pack))     # (1, pack*dim)
        else:
            w1p, w2p, b1p, b2p = w1, w2, b1, b2

        mm_dtype = jnp.bfloat16 if use_bf16_matmul else jnp.float32
        self.w1p = w1p.astype(mm_dtype)
        self.w2p = w2p.astype(mm_dtype)
        self.b1p = b1p            # biases stay f32 (added post-accumulation)
        self.b2p = b2p

    def __call__(self, x):
        orig_shape = x.shape
        dim, channel, pack = self.dim, self.channel, self.pack
        assert orig_shape[-1] == dim

        x2d = x.reshape(-1, dim)
        m = x2d.shape[0]

        # Pad only to `pack` granularity (at most pack-1 rows, ~free).
        m_p = pl.cdiv(m, pack)                 # packed (128-lane) row count
        pad_rows = m_p * pack - m
        if pad_rows:
            x2d = jnp.pad(x2d, ((0, pad_rows), (0, 0)))

        dcol = pack * dim                      # 128 when dim divides 128
        ccol = pack * channel
        xp = x2d.reshape(m_p, dcol)            # free row-major relayout

        # Tile selection: one grid step whenever the problem fits a single
        # tile (strictly better on 1-TC v5e/v6e); otherwise tile at
        # tm_packed_max and let Pallas mask the ragged last tile.
        if m_p <= self.tm_packed_max:
            tm_p = m_p                         # full-extent block (any size OK)
        else:
            tm_p = self.tm_packed_max          # multiple of 8
        grid = pl.cdiv(m_p, tm_p)

        itemsize = jnp.dtype(x.dtype).itemsize
        w_itemsize = jnp.dtype(self.w1p.dtype).itemsize
        flops = int(4 * m_p * dcol * ccol)     # two (block-diag-inflated) matmuls
        bytes_accessed = int(2 * m_p * dcol * itemsize
                             + 2 * dcol * ccol * w_itemsize
                             + (ccol + dcol) * 4)

        out = pl.pallas_call(
            _anglenet_kernel,
            out_shape=jax.ShapeDtypeStruct((m_p, dcol), x.dtype),
            grid_spec=pl.GridSpec(
                grid=(grid,),
                in_specs=[
                    pl.BlockSpec((tm_p, dcol), lambda i: (i, 0)),   # packed x tile
                    pl.BlockSpec((dcol, ccol), lambda i: (0, 0)),   # W1 (resident)
                    pl.BlockSpec((1, ccol), lambda i: (0, 0)),      # b1
                    pl.BlockSpec((ccol, dcol), lambda i: (0, 0)),   # W2 (resident)
                    pl.BlockSpec((1, dcol), lambda i: (0, 0)),      # b2
                ],
                out_specs=pl.BlockSpec((tm_p, dcol), lambda i: (i, 0)),
            ),
            compiler_params=pltpu.CompilerParams(
                dimension_semantics=("parallel",),
                vmem_limit_bytes=48 * 1024 * 1024,
            ),
            cost_estimate=pl.CostEstimate(
                flops=flops, transcendentals=0, bytes_accessed=bytes_accessed),
        )(xp, self.w1p, self.b1p, self.w2p, self.b2p)

        out = out.reshape(m_p * pack, dim)
        if pad_rows:
            out = out[:m]                      # only a few rows; no full-array pad
        return out.reshape(orig_shape)


def reference(x, w1, b1, w2, b2):
    h = jnp.maximum(x, 0.0)
    y = jnp.maximum(h @ w1 + b1, 0.0)
    return x + (y @ w2 + b2)


if __name__ == "__main__":
    # Small shapes consistent with the module: x is [batch, seq, dim].
    batch, seq, dim, channel = 2, 8, 32, 128

    key = jax.random.PRNGKey(0)
    kx, kw1, kb1, kw2, kb2, kx2 = jax.random.split(key, 6)

    x = jax.random.normal(kx, (batch, seq, dim), dtype=jnp.float32)

    # PyTorch Linear weight is (out, in); we store the transposed (in, out) form.
    w1 = jax.random.normal(kw1, (dim, channel), dtype=jnp.float32) * 0.05
    b1 = jax.random.normal(kb1, (channel,), dtype=jnp.float32) * 0.05
    w2 = jax.random.normal(kw2, (channel, dim), dtype=jnp.float32) * 0.05
    b2 = jax.random.normal(kb2, (dim,), dtype=jnp.float32) * 0.05

    block = AngleNetBlockPallas(w1, b1, w2, b2)
    out = jax.block_until_ready(block(x))

    ref = reference(x, w1, b1, w2, b2)
    assert out.shape == x.shape and out.dtype == x.dtype
    # bf16 matmul operands -> looser tolerance vs the pure-f32 reference
    # (the residual path itself stays exact f32).
    assert jnp.allclose(out, ref, atol=2e-2, rtol=2e-2), "mismatch vs reference"

    # Second check: ragged row count + multi-step grid with a masked last tile.
    x2 = jax.random.normal(kx2, (3, 37, dim), dtype=jnp.float32)   # 111 rows
    block_small_tile = AngleNetBlockPallas(w1, b1, w2, b2, tm_packed_max=16)
    out2 = jax.block_until_ready(block_small_tile(x2))
    ref2 = reference(x2, w1, b1, w2, b2)
    assert out2.shape == x2.shape and out2.dtype == x2.dtype
    assert jnp.allclose(out2, ref2, atol=2e-2, rtol=2e-2), "ragged mismatch"

    print("KERNEL_OK")
</pallas_src>

<mosaic_0001>
module attributes {stable_mosaic.version = 11 : i64} {
  func.func @_anglenet_kernel(%arg0: i32, %arg1: memref<4x128xf32, #tpu.memory_space<vmem>>, %arg2: memref<128x512xbf16, #tpu.memory_space<vmem>>, %arg3: memref<1x512xf32, #tpu.memory_space<vmem>>, %arg4: memref<512x128xbf16, #tpu.memory_space<vmem>>, %arg5: memref<1x128xf32, #tpu.memory_space<vmem>>, %arg6: memref<4x128xf32, #tpu.memory_space<vmem>>) attributes {dimension_semantics = [#tpu.dimension_semantics<parallel>], iteration_bounds = array<i64: 1>, scalar_prefetch = 0 : i64, scratch_operands = 0 : i64, tpu.core_type = #tpu.core_type<tc>, window_params = [{transform_indices = @transform_0, window_bounds = array<i64: 4, 128>}, {pipeline_mode = #tpu.pipeline_mode<synchronous>, transform_indices = @transform_1, window_bounds = array<i64: 128, 512>}, {pipeline_mode = #tpu.pipeline_mode<synchronous>, transform_indices = @transform_2, window_bounds = array<i64: 1, 512>}, {pipeline_mode = #tpu.pipeline_mode<synchronous>, transform_indices = @transform_3, window_bounds = array<i64: 512, 128>}, {pipeline_mode = #tpu.pipeline_mode<synchronous>, transform_indices = @transform_4, window_bounds = array<i64: 1, 128>}, {transform_indices = @transform_5, window_bounds = array<i64: 4, 128>}]} {
    %c0 = arith.constant 0 : index
    %c0_0 = arith.constant 0 : index
    %0 = vector.load %arg1[%c0, %c0_0] : memref<4x128xf32, #tpu.memory_space<vmem>>, vector<4x128xf32>
    %cst = arith.constant 0.000000e+00 : f32
    %1 = vector.broadcast %cst : f32 to vector<4x128xf32>
    %2 = arith.maximumf %0, %1 : vector<4x128xf32>
    %3 = arith.truncf %2 : vector<4x128xf32> to vector<4x128xbf16>
    %c0_1 = arith.constant 0 : index
    %c0_2 = arith.constant 0 : index
    %4 = vector.load %arg2[%c0_1, %c0_2] : memref<128x512xbf16, #tpu.memory_space<vmem>>, vector<128x512xbf16>
    %cst_3 = arith.constant dense<0.000000e+00> : vector<4x512xf32>
    %5 = tpu.matmul %3, %4, %cst_3 {dimension_numbers = #tpu.dot_dimension_numbers<[1], [0], [0], [1], [0, 0, 1, 1], [], []>} : vector<4x128xbf16>, vector<128x512xbf16>, vector<4x512xf32> -> vector<4x512xf32>
    %c0_4 = arith.constant 0 : index
    %c0_5 = arith.constant 0 : index
    %6 = vector.load %arg3[%c0_4, %c0_5] : memref<1x512xf32, #tpu.memory_space<vmem>>, vector<1x512xf32>
    %7 = vector.broadcast %6 : vector<1x512xf32> to vector<4x512xf32>
    %8 = arith.addf %5, %7 : vector<4x512xf32>
    %cst_6 = arith.constant 0.000000e+00 : f32
    %9 = vector.broadcast %cst_6 : f32 to vector<4x512xf32>
    %10 = arith.maximumf %8, %9 : vector<4x512xf32>
    %11 = arith.truncf %10 : vector<4x512xf32> to vector<4x512xbf16>
    %c0_7 = arith.constant 0 : index
    %c0_8 = arith.constant 0 : index
    %12 = vector.load %arg4[%c0_7, %c0_8] : memref<512x128xbf16, #tpu.memory_space<vmem>>, vector<512x128xbf16>
    %cst_9 = arith.constant dense<0.000000e+00> : vector<4x128xf32>
    %13 = tpu.matmul %11, %12, %cst_9 {dimension_numbers = #tpu.dot_dimension_numbers<[1], [0], [0], [1], [0, 0, 1, 1], [], []>} : vector<4x512xbf16>, vector<512x128xbf16>, vector<4x128xf32> -> vector<4x128xf32>
    %c0_10 = arith.constant 0 : index
    %c0_11 = arith.constant 0 : index
    %14 = vector.load %arg5[%c0_10, %c0_11] : memref<1x128xf32, #tpu.memory_space<vmem>>, vector<1x128xf32>
    %15 = vector.broadcast %14 : vector<1x128xf32> to vector<4x128xf32>
    %16 = arith.addf %13, %15 : vector<4x128xf32>
    %17 = arith.addf %0, %16 : vector<4x128xf32>
    %c0_12 = arith.constant 0 : index
    %c0_13 = arith.constant 0 : index
    %18 = vector.load %arg6[%c0_12, %c0_13] : memref<4x128xf32, #tpu.memory_space<vmem>>, vector<4x128xf32>
    tpu.vector_store %arg6[%c0_12, %c0_13], %17 {strides = array<i32>} : memref<4x128xf32, #tpu.memory_space<vmem>>, vector<4x128xf32>,
    return
  }
  func.func @transform_0(%arg0: i32) -> (i32, i32) {
    %c0_i32 = arith.constant 0 : i32
    %c0_i32_0 = arith.constant 0 : i32
    return %arg0, %c0_i32 : i32, i32
  }
  func.func @transform_1(%arg0: i32) -> (i32, i32) {
    %c0_i32 = arith.constant 0 : i32
    %c0_i32_0 = arith.constant 0 : i32
    %c0_i32_1 = arith.constant 0 : i32
    return %c0_i32, %c0_i32_0 : i32, i32
  }
  func.func @transform_2(%arg0: i32) -> (i32, i32) {
    %c0_i32 = arith.constant 0 : i32
    %c0_i32_0 = arith.constant 0 : i32
    %c0_i32_1 = arith.constant 0 : i32
    return %c0_i32, %c0_i32_0 : i32, i32
  }
  func.func @transform_3(%arg0: i32) -> (i32, i32) {
    %c0_i32 = arith.constant 0 : i32
    %c0_i32_0 = arith.constant 0 : i32
    %c0_i32_1 = arith.constant 0 : i32
    return %c0_i32, %c0_i32_0 : i32, i32
  }
  func.func @transform_4(%arg0: i32) -> (i32, i32) {
    %c0_i32 = arith.constant 0 : i32
    %c0_i32_0 = arith.constant 0 : i32
    %c0_i32_1 = arith.constant 0 : i32
    return %c0_i32, %c0_i32_0 : i32, i32
  }
  func.func @transform_5(%arg0: i32) -> (i32, i32) {
    %c0_i32 = arith.constant 0 : i32
    %c0_i32_0 = arith.constant 0 : i32
    return %arg0, %c0_i32 : i32, i32
  }
}

</mosaic_0001>

<llo_original>
// kernel: tpu_custom_call.1
$region0: #{tpu_custom_call.1}
  #allocation0 [shape = 'u32[]', space=smem, size = 0x4, offset = 0x4, fixed_abs, tag = 'smem constant byte address 0x4 - core index']
  #allocation1 [shape = 'u32[144,128]{1,0:T(1,128)}', space=vmem, size = 0x12000, scoped, tag = 'internal scratch']
  %s0 = inlined_call_operand.hbm [shape: f32[4,128], index: 0, kind: input, shape index: {}]
  %s1 = inlined_call_operand.hbm [shape: bf16[128,512], index: 1, kind: input, shape index: {}]
  %s2 = inlined_call_operand.vmem [shape: f32[1,512], index: 2, kind: input, shape index: {}]
  %s3 = inlined_call_operand.hbm [shape: bf16[512,128], index: 3, kind: input, shape index: {}]
  %s4 = inlined_call_operand.vmem [shape: f32[1,128], index: 4, kind: input, shape index: {}]
  %s5 = inlined_call_operand.hbm [shape: f32[4,128], index: 5, kind: output, shape index: {}]
  %s6 = sld [smem:[#allocation0]]
  $region42: #{tpu_custom_call.1} parent=0
    _
  %s8 = ssub.s32 1, %s6
  %s9 = scalar_select 0, %s8, %s6
  $region1: #{tpu_custom_call.1} parent=0
    #allocation2 [shape = 'u8[2048]{0}', space=vmem, size = 0x800, scoped, tag = 'input window, operand 0, single buffered']
    #allocation3 [shape = 's32[1]{0}', space=sflag, size = 0x4, scoped, tag = 'scoped memory for tpu_custom_call.1']
    #allocation4 [shape = 's32[1]{0}', space=sflag, size = 0x4, scoped, tag = 'scoped memory for tpu_custom_call.1']
    #allocation5 [shape = 'u8[131072]{0}', space=vmem, size = 0x20000, scoped, tag = 'input window, operand 1, single buffered']
    #allocation6 [shape = 's32[1]{0}', space=sflag, size = 0x4, scoped, tag = 'scoped memory for tpu_custom_call.1']
    #allocation7 [shape = 'u8[131072]{0}', space=vmem, size = 0x20000, scoped, tag = 'input window, operand 3, single buffered']
    #allocation8 [shape = 'u8[2048]{0}', space=vmem, size = 0x800, scoped, tag = 'output window, operand 0, single buffered']
    %10 = vsyncpa [#allocation3], 0
    %11 = vsyncpa [#allocation6], 0
    %12 = vsyncpa [#allocation4], 0
    // Predicated region
    $region2: #{tpu_custom_call.1} parent=1 // pred_check
      _
    $region3: #{tpu_custom_call.1} parent=1 // pred_check_branch
      %14 = sbr.rel (0) target = $region5
    $region4: #{tpu_custom_call.1} parent=1 // pred_region
      %s16 = ssub.s32 64, 64
      %17 = vsyncadd [#allocation3], %s16
      %s19 = sshll.u32 [#allocation2], 4
      %s20 = int_to_ptr.vmem [resolvable:$true] %s19
      %22 = dma.hbm_to_vmem [thread:$0]  %s0, 64, %s20, [#allocation3]
    $region5: #{tpu_custom_call.1} parent=1 // pred_fallthru
      _
    // Predicated region
    $region6: #{tpu_custom_call.1} parent=1 // pred_check
      _
    $region7: #{tpu_custom_call.1} parent=1 // pred_check_branch
      %24 = sbr.rel (0) target = $region9
    $region8: #{tpu_custom_call.1} parent=1 // pred_region
      %s26 = ssub.s32 4096, 4096
      %27 = vsyncadd [#allocation6], %s26
      %s28 = sshll.u32 [#allocation5], 4
      %s29 = int_to_ptr.vmem [resolvable:$true] %s28
      %34 = dma.hbm_to_vmem [thread:$0]  %s1, 4096, %s29, [#allocation6], 256, 256, 16
    $region9: #{tpu_custom_call.1} parent=1 // pred_fallthru
      _
    // Predicated region
    $region10: #{tpu_custom_call.1} parent=1 // pred_check
      _
    $region11: #{tpu_custom_call.1} parent=1 // pred_check_branch
      %36 = sbr.rel (0) target = $region13
    $region12: #{tpu_custom_call.1} parent=1 // pred_region
      _
    $region13: #{tpu_custom_call.1} parent=1 // pred_fallthru
      _
    // Predicated region
    $region14: #{tpu_custom_call.1} parent=1 // pred_check
      _
    $region15: #{tpu_custom_call.1} parent=1 // pred_check_branch
      %38 = sbr.rel (0) target = $region17
    $region16: #{tpu_custom_call.1} parent=1 // pred_region
      %s40 = ssub.s32 4096, 4096
      %41 = vsyncadd [#allocation6], %s40
      %s42 = sshll.u32 [#allocation7], 4
      %s43 = int_to_ptr.vmem [resolvable:$true] %s42
      %48 = dma.hbm_to_vmem [thread:$0]  %s3, 4096, %s43, [#allocation6], 64, 64, 4
    $region17: #{tpu_custom_call.1} parent=1 // pred_fallthru
      _
    // Predicated region
    $region18: #{tpu_custom_call.1} parent=1 // pred_check
      _
    $region19: #{tpu_custom_call.1} parent=1 // pred_check_branch
      %50 = sbr.rel (0) target = $region21
    $region20: #{tpu_custom_call.1} parent=1 // pred_region
      _
    $region21: #{tpu_custom_call.1} parent=1 // pred_fallthru
      _
    // Predicated region
    $region22: #{tpu_custom_call.1} parent=1 // pred_check
      _
    $region23: #{tpu_custom_call.1} parent=1 // pred_check_branch
      %52 = sbr.rel (0) target = $region25
    $region24: #{tpu_custom_call.1} parent=1 // pred_region
      %53 = dma.done [#allocation3], 64
    $region25: #{tpu_custom_call.1} parent=1 // pred_fallthru
      _
    // Predicated region
    $region26: #{tpu_custom_call.1} parent=1 // pred_check
      _
    $region27: #{tpu_custom_call.1} parent=1 // pred_check_branch
      %55 = sbr.rel (0) target = $region29
    $region28: #{tpu_custom_call.1} parent=1 // pred_region
      %56 = dma.done [#allocation6], 4096
    $region29: #{tpu_custom_call.1} parent=1 // pred_fallthru
      _
    // Predicated region
    $region30: #{tpu_custom_call.1} parent=1 // pred_check
      _
    $region31: #{tpu_custom_call.1} parent=1 // pred_check_branch
      %58 = sbr.rel (0) target = $region33
    $region32: #{tpu_custom_call.1} parent=1 // pred_region
      %59 = dma.done [#allocation6], 4096
    $region33: #{tpu_custom_call.1} parent=1 // pred_fallthru
      _
    %v61 = vld [vmem:[#allocation2] sm:$0xf]
    %v62 = vmax.f32 %v61, 0.0
    %v63 = vpack.c.bf16 %v62, %v62
    %v64 = vld [vmem:[#allocation5] sm:$0xff]
    %v65 = vld [vmem:[#allocation5 + $0x8] sm:$0xff]
    %v66 = vld [vmem:[#allocation5 + $0x10] sm:$0xff]
    %v67 = vld [vmem:[#allocation5 + $0x18] sm:$0xff]
    %v68 = vld [vmem:[#allocation5 + $0x20] sm:$0xff]
    %v69 = vld [vmem:[#allocation5 + $0x28] sm:$0xff]
    %v70 = vld [vmem:[#allocation5 + $0x30] sm:$0xff]
    %v71 = vld [vmem:[#allocation5 + $0x38] sm:$0xff]
    %v72 = vld [vmem:[#allocation5 + $0x40] sm:$0xff]
    %v73 = vld [vmem:[#allocation5 + $0x48] sm:$0xff]
    %v74 = vld [vmem:[#allocation5 + $0x50] sm:$0xff]
    %v75 = vld [vmem:[#allocation5 + $0x58] sm:$0xff]
    %v76 = vld [vmem:[#allocation5 + $0x60] sm:$0xff]
    %v77 = vld [vmem:[#allocation5 + $0x68] sm:$0xff]
    %v78 = vld [vmem:[#allocation5 + $0x70] sm:$0xff]
    %v79 = vld [vmem:[#allocation5 + $0x78] sm:$0xff]
    %v80 = vld [vmem:[#allocation5 + $0x80] sm:$0xff]
    %v81 = vld [vmem:[#allocation5 + $0x88] sm:$0xff]
    %v82 = vld [vmem:[#allocation5 + $0x90] sm:$0xff]
    %v83 = vld [vmem:[#allocation5 + $0x98] sm:$0xff]
    %v84 = vld [vmem:[#allocation5 + $0xa0] sm:$0xff]
    %v85 = vld [vmem:[#allocation5 + $0xa8] sm:$0xff]
    %v86 = vld [vmem:[#allocation5 + $0xb0] sm:$0xff]
    %v87 = vld [vmem:[#allocation5 + $0xb8] sm:$0xff]
    %v88 = vld [vmem:[#allocation5 + $0xc0] sm:$0xff]
    %v89 = vld [vmem:[#allocation5 + $0xc8] sm:$0xff]
    %v90 = vld [vmem:[#allocation5 + $0xd0] sm:$0xff]
    %v91 = vld [vmem:[#allocation5 + $0xd8] sm:$0xff]
    %v92 = vld [vmem:[#allocation5 + $0xe0] sm:$0xff]
    %v93 = vld [vmem:[#allocation5 + $0xe8] sm:$0xff]
    %v94 = vld [vmem:[#allocation5 + $0xf0] sm:$0xff]
    %v95 = vld [vmem:[#allocation5 + $0xf8] sm:$0xff]
    %v96 = vld [vmem:[%s2] sm:$0xf]
    %v98 = vlaneseq
    %v99 = vshrl.u32 %v98, 7
    %v100 = vsub.s32 0, %v99
    %v101 = vrot.slane %v96, %v100
    %v102 = vlaneseq
    %v103 = vshrl.u32 %v102, 7
    %v104 = vsub.s32 1, %v103
    %v105 = vrot.slane %v96, %v104
    %v106 = vlaneseq
    %v107 = vshrl.u32 %v106, 7
    %v108 = vsub.s32 2, %v107
    %v109 = vrot.slane %v96, %v108
    %v110 = vlaneseq
    %v111 = vshrl.u32 %v110, 7
    %v112 = vsub.s32 3, %v111
    %v113 = vrot.slane %v96, %v112
    %v150 = vunpack.c.l.b16 %v64
    %v151 = vunpack.c.h.b16 %v64
    %v152 = vunpack.c.l.b16 %v65
    %v153 = vunpack.c.h.b16 %v65
    %v154 = vunpack.c.l.b16 %v66
    %v155 = vunpack.c.h.b16 %v66
    %v156 = vunpack.c.l.b16 %v67
    %v157 = vunpack.c.h.b16 %v67
    %v158 = vunpack.c.l.b16 %v68
    %v159 = vunpack.c.h.b16 %v68
    %v160 = vunpack.c.l.b16 %v69
    %v161 = vunpack.c.h.b16 %v69
    %v162 = vunpack.c.l.b16 %v70
    %v163 = vunpack.c.h.b16 %v70
    %v164 = vunpack.c.l.b16 %v71
    %v165 = vunpack.c.h.b16 %v71
    %v166 = vunpack.c.l.b16 %v72
    %v167 = vunpack.c.h.b16 %v72
    %v168 = vunpack.c.l.b16 %v73
    %v169 = vunpack.c.h.b16 %v73
    %v170 = vunpack.c.l.b16 %v74
    %v171 = vunpack.c.h.b16 %v74
    %v172 = vunpack.c.l.b16 %v75
    %v173 = vunpack.c.h.b16 %v75
    %v174 = vunpack.c.l.b16 %v76
    %v175 = vunpack.c.h.b16 %v76
    %v176 = vunpack.c.l.b16 %v77
    %v177 = vunpack.c.h.b16 %v77
    %v178 = vunpack.c.l.b16 %v78
    %v179 = vunpack.c.h.b16 %v78
    %v180 = vunpack.c.l.b16 %v79
    %v181 = vunpack.c.h.b16 %v79
    %v182 = vunpack.c.l.b16 %v80
    %v183 = vunpack.c.h.b16 %v80
    %v184 = vunpack.c.l.b16 %v81
    %v185 = vunpack.c.h.b16 %v81
    %v186 = vunpack.c.l.b16 %v82
    %v187 = vunpack.c.h.b16 %v82
    %v188 = vunpack.c.l.b16 %v83
    %v189 = vunpack.c.h.b16 %v83
    %v190 = vunpack.c.l.b16 %v84
    %v191 = vunpack.c.h.b16 %v84
    %v192 = vunpack.c.l.b16 %v85
    %v193 = vunpack.c.h.b16 %v85
    %v194 = vunpack.c.l.b16 %v86
    %v195 = vunpack.c.h.b16 %v86
    %v196 = vunpack.c.l.b16 %v87
    %v197 = vunpack.c.h.b16 %v87
    %v198 = vunpack.c.l.b16 %v88
    %v199 = vunpack.c.h.b16 %v88
    %v200 = vunpack.c.l.b16 %v89
    %v201 = vunpack.c.h.b16 %v89
    %v202 = vunpack.c.l.b16 %v90
    %v203 = vunpack.c.h.b16 %v90
    %v204 = vunpack.c.l.b16 %v91
    %v205 = vunpack.c.h.b16 %v91
    %v206 = vunpack.c.l.b16 %v92
    %v207 = vunpack.c.h.b16 %v92
    %v208 = vunpack.c.l.b16 %v93
    %v209 = vunpack.c.h.b16 %v93
    %v210 = vunpack.c.l.b16 %v94
    %v211 = vunpack.c.h.b16 %v94
    %v212 = vunpack.c.l.b16 %v95
    %v213 = vunpack.c.h.b16 %v95
    %v214 = vpack.c.b16 %v154, %v150
    %v215 = vpack.c.b16 %v155, %v151
    %v216 = vpack.c.b16 %v156, %v152
    %v217 = vpack.c.b16 %v157, %v153
    %v218 = vpack.c.b16 %v162, %v158
    %v219 = vpack.c.b16 %v163, %v159
    %v220 = vpack.c.b16 %v164, %v160
    %v221 = vpack.c.b16 %v165, %v161
    %v222 = vpack.c.b16 %v170, %v166
    %v223 = vpack.c.b16 %v171, %v167
    %v224 = vpack.c.b16 %v172, %v168
    %v225 = vpack.c.b16 %v173, %v169
    %v226 = vpack.c.b16 %v178, %v174
    %v227 = vpack.c.b16 %v179, %v175
    %v228 = vpack.c.b16 %v180, %v176
    %v229 = vpack.c.b16 %v181, %v177
    %v230 = vpack.c.b16 %v186, %v182
    %v231 = vpack.c.b16 %v187, %v183
    %v232 = vpack.c.b16 %v188, %v184
    %v233 = vpack.c.b16 %v189, %v185
    %v234 = vpack.c.b16 %v194, %v190
    %v235 = vpack.c.b16 %v195, %v191
    %v236 = vpack.c.b16 %v196, %v192
    %v237 = vpack.c.b16 %v197, %v193
    %v238 = vpack.c.b16 %v202, %v198
    %v239 = vpack.c.b16 %v203, %v199
    %v240 = vpack.c.b16 %v204, %v200
    %v241 = vpack.c.b16 %v205, %v201
    %v242 = vpack.c.b16 %v210, %v206
    %v243 = vpack.c.b16 %v211, %v207
    %v244 = vpack.c.b16 %v212, %v208
    %v245 = vpack.c.b16 %v213, %v209
    %278 = vmatprep.subr.bf16.mxu0 %v215
    %279 = vmatpush1.bf16.msra.mxu0 %v214
    %280 = vmatprep.subr.bf16.mxu0 %v219
    %281 = vmatpush1.bf16.msra.mxu0 %v218
    %282 = vmatprep.subr.bf16.mxu0 %v223
    %283 = vmatpush1.bf16.msra.mxu0 %v222
    %284 = vmatprep.subr.bf16.mxu0 %v227
    %285 = vmatpush1.bf16.msra.mxu0 %v226
    %286 = vmatprep.subr.bf16.mxu0 %v231
    %287 = vmatpush1.bf16.msra.mxu0 %v230
    %288 = vmatprep.subr.bf16.mxu0 %v235
    %289 = vmatpush1.bf16.msra.mxu0 %v234
    %290 = vmatprep.subr.bf16.mxu0 %v239
    %291 = vmatpush1.bf16.msra.mxu0 %v238
    %292 = vmatprep.subr.bf16.mxu0 %v243
    %293 = vmatpush1.bf16.msra.mxu0 %v242
    %294 = vmatprep.subr.bf16.mxu0 0
    %295 = vmatpush1.bf16.msra.mxu0 0
    %296 = vmatprep.subr.bf16.mxu0 0
    %297 = vmatpush1.bf16.msra.mxu0 0
    %298 = vmatprep.subr.bf16.mxu0 0
    %299 = vmatpush1.bf16.msra.mxu0 0
    %300 = vmatprep.subr.bf16.mxu0 0
    %301 = vmatpush1.bf16.msra.mxu0 0
    %302 = vmatprep.subr.bf16.mxu0 0
    %303 = vmatpush1.bf16.msra.mxu0 0
    %304 = vmatprep.subr.bf16.mxu0 0
    %305 = vmatpush1.bf16.msra.mxu0 0
    %306 = vmatprep.subr.bf16.mxu0 0
    %307 = vmatpush1.bf16.msra.mxu0 0
    %308 = vmatprep.subr.bf16.mxu0 0
    %309 = vmatpush1.bf16.msra.mxu0 0
    %310 = vmatprep.mubr.bf16.mxu0 0
    %311 = vmatmul.mubr.bf16.gmra.mrb[0].mxu0 %v63
    %v312 = vpop.f32.mrb[0].mxu0
    %v313 = vadd.f32 %v101, %v312
    %v314 = vpop.f32.mrb[0].mxu0
    %v315 = vadd.f32 %v105, %v314
    %v316 = vpop.f32.mrb[0].mxu0
    %v317 = vpop.f32.mrb[0].mxu0
    %318 = vdwg.mxu0
    %319 = vmatprep.subr.bf16.mxu0 %v217
    %320 = vmatpush1.bf16.msra.mxu0 %v216
    %321 = vmatprep.subr.bf16.mxu0 %v221
    %322 = vmatpush1.bf16.msra.mxu0 %v220
    %323 = vmatprep.subr.bf16.mxu0 %v225
    %324 = vmatpush1.bf16.msra.mxu0 %v224
    %325 = vmatprep.subr.bf16.mxu0 %v229
    %326 = vmatpush1.bf16.msra.mxu0 %v228
    %327 = vmatprep.subr.bf16.mxu0 %v233
    %328 = vmatpush1.bf16.msra.mxu0 %v232
    %329 = vmatprep.subr.bf16.mxu0 %v237
    %330 = vmatpush1.bf16.msra.mxu0 %v236
    %331 = vmatprep.subr.bf16.mxu0 %v241
    %332 = vmatpush1.bf16.msra.mxu0 %v240
    %333 = vmatprep.subr.bf16.mxu0 %v245
    %334 = vmatpush1.bf16.msra.mxu0 %v244
    %335 = vmatprep.subr.bf16.mxu0 0
    %336 = vmatpush1.bf16.msra.mxu0 0
    %337 = vmatprep.subr.bf16.mxu0 0
    %338 = vmatpush1.bf16.msra.mxu0 0
    %339 = vmatprep.subr.bf16.mxu0 0
    %340 = vmatpush1.bf16.msra.mxu0 0
    %341 = vmatprep.subr.bf16.mxu0 0
    %342 = vmatpush1.bf16.msra.mxu0 0
    %343 = vmatprep.subr.bf16.mxu0 0
    %344 = vmatpush1.bf16.msra.mxu0 0
    %345 = vmatprep.subr.bf16.mxu0 0
    %346 = vmatpush1.bf16.msra.mxu0 0
    %347 = vmatprep.subr.bf16.mxu0 0
    %348 = vmatpush1.bf16.msra.mxu0 0
    %349 = vmatprep.subr.bf16.mxu0 0
    %350 = vmatpush1.bf16.msra.mxu0 0
    %351 = vmatprep.mubr.bf16.mxu0 0
    %352 = vmatmul.mubr.bf16.gmra.mrb[0].mxu0 %v63
    %v353 = vpop.f32.mrb[0].mxu0
    %v354 = vadd.f32 %v109, %v353
    %v355 = vpop.f32.mrb[0].mxu0
    %v356 = vadd.f32 %v113, %v355
    %v357 = vpop.f32.mrb[0].mxu0
    %v358 = vpop.f32.mrb[0].mxu0
    %359 = vdwg.mxu0
    %v360 = vmax.f32 %v313, 0.0
    %v361 = vmax.f32 %v315, 0.0
    %v362 = vmax.f32 %v354, 0.0
    %v363 = vmax.f32 %v356, 0.0
    %v364 = vpack.c.bf16 %v360, %v360
    %v365 = vpack.c.bf16 %v361, %v361
    %v366 = vpack.c.bf16 %v362, %v362
    %v367 = vpack.c.bf16 %v363, %v363
    %v368 = vld [vmem:[#allocation7] sm:$0xf]
    %v369 = vld [vmem:[#allocation7 + $0x4] sm:$0xf]
    %v370 = vld [vmem:[#allocation7 + $0x8] sm:$0xf]
    %v371 = vld [vmem:[#allocation7 + $0xc] sm:$0xf]
    %v372 = vld [vmem:[#allocation7 + $0x10] sm:$0xf]
    %v373 = vld [vmem:[#allocation7 + $0x14] sm:$0xf]
    %v374 = vld [vmem:[#allocation7 + $0x18] sm:$0xf]
    %v375 = vld [vmem:[#allocation7 + $0x1c] sm:$0xf]
    %v376 = vld [vmem:[#allocation7 + $0x20] sm:$0xf]
    %v377 = vld [vmem:[#allocation7 + $0x24] sm:$0xf]
    %v378 = vld [vmem:[#allocation7 + $0x28] sm:$0xf]
    %v379 = vld [vmem:[#allocation7 + $0x2c] sm:$0xf]
    %v380 = vld [vmem:[#allocation7 + $0x30] sm:$0xf]
    %v381 = vld [vmem:[#allocation7 + $0x34] sm:$0xf]
    %v382 = vld [vmem:[#allocation7 + $0x38] sm:$0xf]
    %v383 = vld [vmem:[#allocation7 + $0x3c] sm:$0xf]
    %v384 = vld [vmem:[#allocation7 + $0x40] sm:$0xf]
    %v385 = vld [vmem:[#allocation7 + $0x44] sm:$0xf]
    %v386 = vld [vmem:[#allocation7 + $0x48] sm:$0xf]
    %v387 = vld [vmem:[#allocation7 + $0x4c] sm:$0xf]
    %v388 = vld [vmem:[#allocation7 + $0x50] sm:$0xf]
    %v389 = vld [vmem:[#allocation7 + $0x54] sm:$0xf]
    %v390 = vld [vmem:[#allocation7 + $0x58] sm:$0xf]
    %v391 = vld [vmem:[#allocation7 + $0x5c] sm:$0xf]
    %v392 = vld [vmem:[#allocation7 + $0x60] sm:$0xf]
    %v393 = vld [vmem:[#allocation7 + $0x64] sm:$0xf]
    %v394 = vld [vmem:[#allocation7 + $0x68] sm:$0xf]
    %v395 = vld [vmem:[#allocation7 + $0x6c] sm:$0xf]
    %v396 = vld [vmem:[#allocation7 + $0x70] sm:$0xf]
    %v397 = vld [vmem:[#allocation7 + $0x74] sm:$0xf]
    %v398 = vld [vmem:[#allocation7 + $0x78] sm:$0xf]
    %v399 = vld [vmem:[#allocation7 + $0x7c] sm:$0xf]
    %v400 = vld [vmem:[#allocation7 + $0x80] sm:$0xf]
    %v401 = vld [vmem:[#allocation7 + $0x84] sm:$0xf]
    %v402 = vld [vmem:[#allocation7 + $0x88] sm:$0xf]
    %v403 = vld [vmem:[#allocation7 + $0x8c] sm:$0xf]
    %v404 = vld [vmem:[#allocation7 + $0x90] sm:$0xf]
    %v405 = vld [vmem:[#allocation7 + $0x94] sm:$0xf]
    %v406 = vld [vmem:[#allocation7 + $0x98] sm:$0xf]
    %v407 = vld [vmem:[#allocation7 + $0x9c] sm:$0xf]
    %v408 = vld [vmem:[#allocation7 + $0xa0] sm:$0xf]
    %v409 = vld [vmem:[#allocation7 + $0xa4] sm:$0xf]
    %v410 = vld [vmem:[#allocation7 + $0xa8] sm:$0xf]
    %v411 = vld [vmem:[#allocation7 + $0xac] sm:$0xf]
    %v412 = vld [vmem:[#allocation7 + $0xb0] sm:$0xf]
    %v413 = vld [vmem:[#allocation7 + $0xb4] sm:$0xf]
    %v414 = vld [vmem:[#allocation7 + $0xb8] sm:$0xf]
    %v415 = vld [vmem:[#allocation7 + $0xbc] sm:$0xf]
    %v416 = vld [vmem:[#allocation7 + $0xc0] sm:$0xf]
    %v417 = vld [vmem:[#allocation7 + $0xc4] sm:$0xf]
    %v418 = vld [vmem:[#allocation7 + $0xc8] sm:$0xf]
    %v419 = vld [vmem:[#allocation7 + $0xcc] sm:$0xf]
    %v420 = vld [vmem:[#allocation7 + $0xd0] sm:$0xf]
    %v421 = vld [vmem:[#allocation7 + $0xd4] sm:$0xf]
    %v422 = vld [vmem:[#allocation7 + $0xd8] sm:$0xf]
    %v423 = vld [vmem:[#allocation7 + $0xdc] sm:$0xf]
    %v424 = vld [vmem:[#allocation7 + $0xe0] sm:$0xf]
    %v425 = vld [vmem:[#allocation7 + $0xe4] sm:$0xf]
    %v426 = vld [vmem:[#allocation7 + $0xe8] sm:$0xf]
    %v427 = vld [vmem:[#allocation7 + $0xec] sm:$0xf]
    %v428 = vld [vmem:[#allocation7 + $0xf0] sm:$0xf]
    %v429 = vld [vmem:[#allocation7 + $0xf4] sm:$0xf]
    %v430 = vld [vmem:[#allocation7 + $0xf8] sm:$0xf]
    %v431 = vld [vmem:[#allocation7 + $0xfc] sm:$0xf]
    %v432 = vld [vmem:[%s4] sm:$0x1]
    %v434 = vlaneseq
    %v435 = vshrl.u32 %v434, 7
    %v436 = vsub.s32 0, %v435
    %v437 = vrot.slane %v432, %v436
    %v503 = vunpack.c.l.b16 %v368
    %v504 = vunpack.c.l.b16 %v369
    %v505 = vunpack.c.l.b16 %v370
    %v506 = vunpack.c.l.b16 %v371
    %v507 = vunpack.c.l.b16 %v372
    %v508 = vunpack.c.l.b16 %v373
    %v509 = vunpack.c.l.b16 %v374
    %v510 = vunpack.c.l.b16 %v375
    %v511 = vunpack.c.l.b16 %v376
    %v512 = vunpack.c.l.b16 %v377
    %v513 = vunpack.c.l.b16 %v378
    %v514 = vunpack.c.l.b16 %v379
    %v515 = vunpack.c.l.b16 %v380
    %v516 = vunpack.c.l.b16 %v381
    %v517 = vunpack.c.l.b16 %v382
    %v518 = vunpack.c.l.b16 %v383
    %v519 = vunpack.c.l.b16 %v384
    %v520 = vunpack.c.l.b16 %v385
    %v521 = vunpack.c.l.b16 %v386
    %v522 = vunpack.c.l.b16 %v387
    %v523 = vunpack.c.l.b16 %v388
    %v524 = vunpack.c.l.b16 %v389
    %v525 = vunpack.c.l.b16 %v390
    %v526 = vunpack.c.l.b16 %v391
    %v527 = vunpack.c.l.b16 %v392
    %v528 = vunpack.c.l.b16 %v393
    %v529 = vunpack.c.l.b16 %v394
    %v530 = vunpack.c.l.b16 %v395
    %v531 = vunpack.c.l.b16 %v396
    %v532 = vunpack.c.l.b16 %v397
    %v533 = vunpack.c.l.b16 %v398
    %v534 = vunpack.c.l.b16 %v399
    %v535 = vunpack.c.l.b16 %v400
    %v536 = vunpack.c.l.b16 %v401
    %v537 = vunpack.c.l.b16 %v402
    %v538 = vunpack.c.l.b16 %v403
    %v539 = vunpack.c.l.b16 %v404
    %v540 = vunpack.c.l.b16 %v405
    %v541 = vunpack.c.l.b16 %v406
    %v542 = vunpack.c.l.b16 %v407
    %v543 = vunpack.c.l.b16 %v408
    %v544 = vunpack.c.l.b16 %v409
    %v545 = vunpack.c.l.b16 %v410
    %v546 = vunpack.c.l.b16 %v411
    %v547 = vunpack.c.l.b16 %v412
    %v548 = vunpack.c.l.b16 %v413
    %v549 = vunpack.c.l.b16 %v414
    %v550 = vunpack.c.l.b16 %v415
    %v551 = vunpack.c.l.b16 %v416
    %v552 = vunpack.c.l.b16 %v417
    %v553 = vunpack.c.l.b16 %v418
    %v554 = vunpack.c.l.b16 %v419
    %v555 = vunpack.c.l.b16 %v420
    %v556 = vunpack.c.l.b16 %v421
    %v557 = vunpack.c.l.b16 %v422
    %v558 = vunpack.c.l.b16 %v423
    %v559 = vunpack.c.l.b16 %v424
    %v560 = vunpack.c.l.b16 %v425
    %v561 = vunpack.c.l.b16 %v426
    %v562 = vunpack.c.l.b16 %v427
    %v563 = vunpack.c.l.b16 %v428
    %v564 = vunpack.c.l.b16 %v429
    %v565 = vunpack.c.l.b16 %v430
    %v566 = vunpack.c.l.b16 %v431
    %v567 = vpack.c.b16 %v504, %v503
    %v568 = vpack.c.b16 %v506, %v505
    %v569 = vpack.c.b16 %v508, %v507
    %v570 = vpack.c.b16 %v510, %v509
    %v571 = vpack.c.b16 %v512, %v511
    %v572 = vpack.c.b16 %v514, %v513
    %v573 = vpack.c.b16 %v516, %v515
    %v574 = vpack.c.b16 %v518, %v517
    %v575 = vpack.c.b16 %v520, %v519
    %v576 = vpack.c.b16 %v522, %v521
    %v577 = vpack.c.b16 %v524, %v523
    %v578 = vpack.c.b16 %v526, %v525
    %v579 = vpack.c.b16 %v528, %v527
    %v580 = vpack.c.b16 %v530, %v529
    %v581 = vpack.c.b16 %v532, %v531
    %v582 = vpack.c.b16 %v534, %v533
    %v583 = vpack.c.b16 %v536, %v535
    %v584 = vpack.c.b16 %v538, %v537
    %v585 = vpack.c.b16 %v540, %v539
    %v586 = vpack.c.b16 %v542, %v541
    %v587 = vpack.c.b16 %v544, %v543
    %v588 = vpack.c.b16 %v546, %v545
    %v589 = vpack.c.b16 %v548, %v547
    %v590 = vpack.c.b16 %v550, %v549
    %v591 = vpack.c.b16 %v552, %v551
    %v592 = vpack.c.b16 %v554, %v553
    %v593 = vpack.c.b16 %v556, %v555
    %v594 = vpack.c.b16 %v558, %v557
    %v595 = vpack.c.b16 %v560, %v559
    %v596 = vpack.c.b16 %v562, %v561
    %v597 = vpack.c.b16 %v564, %v563
    %v598 = vpack.c.b16 %v566, %v565
    %631 = vmatprep.subr.bf16.mxu0 0
    %632 = vmatpush1.bf16.msra.mxu0 %v567
    %633 = vmatprep.subr.bf16.mxu0 0
    %634 = vmatpush1.bf16.msra.mxu0 %v568
    %635 = vmatprep.subr.bf16.mxu0 0
    %636 = vmatpush1.bf16.msra.mxu0 %v569
    %637 = vmatprep.subr.bf16.mxu0 0
    %638 = vmatpush1.bf16.msra.mxu0 %v570
    %639 = vmatprep.subr.bf16.mxu0 0
    %640 = vmatpush1.bf16.msra.mxu0 %v571
    %641 = vmatprep.subr.bf16.mxu0 0
    %642 = vmatpush1.bf16.msra.mxu0 %v572
    %643 = vmatprep.subr.bf16.mxu0 0
    %644 = vmatpush1.bf16.msra.mxu0 %v573
    %645 = vmatprep.subr.bf16.mxu0 0
    %646 = vmatpush1.bf16.msra.mxu0 %v574
    %647 = vmatprep.subr.bf16.mxu0 0
    %648 = vmatpush1.bf16.msra.mxu0 %v575
    %649 = vmatprep.subr.bf16.mxu0 0
    %650 = vmatpush1.bf16.msra.mxu0 %v576
    %651 = vmatprep.subr.bf16.mxu0 0
    %652 = vmatpush1.bf16.msra.mxu0 %v577
    %653 = vmatprep.subr.bf16.mxu0 0
    %654 = vmatpush1.bf16.msra.mxu0 %v578
    %655 = vmatprep.subr.bf16.mxu0 0
    %656 = vmatpush1.bf16.msra.mxu0 %v579
    %657 = vmatprep.subr.bf16.mxu0 0
    %658 = vmatpush1.bf16.msra.mxu0 %v580
    %659 = vmatprep.subr.bf16.mxu0 0
    %660 = vmatpush1.bf16.msra.mxu0 %v581
    %661 = vmatprep.subr.bf16.mxu0 0
    %662 = vmatpush1.bf16.msra.mxu0 %v582
    %663 = vmatprep.mubr.bf16.mxu0 %v365
    %664 = vmatmul.mubr.bf16.gmra.mrb[0].mxu0 %v364
    %v665 = vpop.f32.mrb[0].mxu0
    %v666 = vadd.f32 %v437, %v665
    %v667 = vpop.f32.mrb[0].mxu0
    %v668 = vpop.f32.mrb[0].mxu0
    %v669 = vpop.f32.mrb[0].mxu0
    %670 = vdwg.mxu0
    %671 = vmatprep.subr.bf16.mxu0 0
    %672 = vmatpush1.bf16.msra.mxu0 %v583
    %673 = vmatprep.subr.bf16.mxu0 0
    %674 = vmatpush1.bf16.msra.mxu0 %v584
    %675 = vmatprep.subr.bf16.mxu0 0
    %676 = vmatpush1.bf16.msra.mxu0 %v585
    %677 = vmatprep.subr.bf16.mxu0 0
    %678 = vmatpush1.bf16.msra.mxu0 %v586
    %679 = vmatprep.subr.bf16.mxu0 0
    %680 = vmatpush1.bf16.msra.mxu0 %v587
    %681 = vmatprep.subr.bf16.mxu0 0
    %682 = vmatpush1.bf16.msra.mxu0 %v588
    %683 = vmatprep.subr.bf16.mxu0 0
    %684 = vmatpush1.bf16.msra.mxu0 %v589
    %685 = vmatprep.subr.bf16.mxu0 0
    %686 = vmatpush1.bf16.msra.mxu0 %v590
    %687 = vmatprep.subr.bf16.mxu0 0
    %688 = vmatpush1.bf16.msra.mxu0 %v591
    %689 = vmatprep.subr.bf16.mxu0 0
    %690 = vmatpush1.bf16.msra.mxu0 %v592
    %691 = vmatprep.subr.bf16.mxu0 0
    %692 = vmatpush1.bf16.msra.mxu0 %v593
    %693 = vmatprep.subr.bf16.mxu0 0
    %694 = vmatpush1.bf16.msra.mxu0 %v594
    %695 = vmatprep.subr.bf16.mxu0 0
    %696 = vmatpush1.bf16.msra.mxu0 %v595
    %697 = vmatprep.subr.bf16.mxu0 0
    %698 = vmatpush1.bf16.msra.mxu0 %v596
    %699 = vmatprep.subr.bf16.mxu0 0
    %700 = vmatpush1.bf16.msra.mxu0 %v597
    %701 = vmatprep.subr.bf16.mxu0 0
    %702 = vmatpush1.bf16.msra.mxu0 %v598
    %703 = vmatprep.mubr.bf16.mxu0 %v367
    %704 = vmatmul.mubr.bf16.gmra.mrb[0].mxu0 %v366
    %v705 = vpop.f32.mrb[0].mxu0
    %v706 = vadd.f32 %v666, %v705
    %v707 = vpop.f32.mrb[0].mxu0
    %v708 = vpop.f32.mrb[0].mxu0
    %v709 = vpop.f32.mrb[0].mxu0
    %710 = vdwg.mxu0
    %v711 = vadd.f32 %v61, %v706
    %712 = vst [vmem:[#allocation8] sm:$0xf] %v711
    // Predicated region
    $region34: #{tpu_custom_call.1} parent=1 // pred_check
      _
    $region35: #{tpu_custom_call.1} parent=1 // pred_check_branch
      %714 = sbr.rel (0) target = $region37
    $region36: #{tpu_custom_call.1} parent=1 // pred_region
      %s716 = ssub.s32 64, 64
      %717 = vsyncadd [#allocation4], %s716
      %s719 = sshll.u32 [#allocation8], 4
      %s720 = int_to_ptr.vmem [resolvable:$true] %s719
      %722 = dma.vmem_to_hbm [thread:$0]  %s720, 64, %s5, [#allocation4]
    $region37: #{tpu_custom_call.1} parent=1 // pred_fallthru
      _
    // Predicated region
    $region38: #{tpu_custom_call.1} parent=1 // pred_check
      _
    $region39: #{tpu_custom_call.1} parent=1 // pred_check_branch
      %724 = sbr.rel (0) target = $region41
    $region40: #{tpu_custom_call.1} parent=1 // pred_region
      %725 = dma.done [#allocation4], 64
    $region41: #{tpu_custom_call.1} parent=1 // pred_fallthru
      _
    %726 = vsyncpa [#allocation3], 1
    %727 = vsyncpa [#allocation6], 1
    %728 = vsyncpa [#allocation4], 1

</llo_original>
